<compile_context>
chip_gen: v7x
topology: tpu7x:2x2x1
jax: 0.10.0
libtpu: 0.0.40
codegen_flags: <defaults>
</compile_context>

<pallas_src>
import functools

import jax
import jax.numpy as jnp
from jax.experimental import pallas as pl
from jax.experimental.pallas import tpu as pltpu


# ----------------------------------------------------------------------------
# Block-sizing helpers ((8,128)-legal blocks, generation-safe VMEM budgets)
# ----------------------------------------------------------------------------
def _divisors(n):
    ds = set()
    i = 1
    while i * i <= n:
        if n % i == 0:
            ds.add(i)
            ds.add(n // i)
        i += 1
    return sorted(ds)


def _pick_aligned_tile(dim, unit, cap, prefer_split=False):
    """Largest divisor of `dim` that is a multiple of `unit` (or `dim` itself,
    a full-extent block is always legal), <= cap.  If `prefer_split`, favour
    tiles <= dim//2 so this grid axis contributes >= 2 steps (v7x megacore)."""
    cands = sorted({d for d in _divisors(dim) if d % unit == 0} | {dim})
    ok = [d for d in cands if d <= cap]
    if prefer_split:
        split_ok = [d for d in ok if d <= dim // 2]
        if split_ok:
            return max(split_ok)
    if ok:
        return max(ok)
    return min(cands)  # forced oversize block (degenerate shapes only)


def _vmem_limit_bytes(per_step_bytes):
    """Double-buffered per-step bytes + headroom, clamped so the scoped VMEM
    request stays safe on every generation (v7x: 64 MiB physical)."""
    need = 2 * int(per_step_bytes) + (2 << 20)
    return int(min(48 << 20, max(8 << 20, need)))


# ----------------------------------------------------------------------------
# Depth statistics kernel: disparity + single-pass moments
# ----------------------------------------------------------------------------
def _depth_stats_kernel(d_ref, disp_ref, part_ref, *, approx):
    d = d_ref[...]                                  # (rows, l_tile) f32
    # approx=True -> EUP vrcp slot; hides fully under DMA even at v7x HBM BW.
    disp = pl.reciprocal(d, approx=approx)
    disp_ref[...] = disp

    s_d = jnp.sum(d)
    s_d2 = jnp.sum(d * d)
    s_disp = jnp.sum(disp)
    lane = jax.lax.broadcasted_iota(jnp.int32, (8, 128), 1)
    # Each grid cell writes its own full (8,128) tile of partial sums
    # (lanes {0,1,2} of every sublane) -> blocks are (8,128)-legal and the
    # grid axes stay "parallel" (no resident accumulator, megacore-safe).
    part_ref[0] = jnp.where(lane == 0, s_d,
                  jnp.where(lane == 1, s_d2,
                  jnp.where(lane == 2, s_disp, 0.0)))


def depth_stats(depth, *, block_bytes_cap=4 << 20, approx_reciprocal=True):
    """depth (N,1,H,W) f32 -> (disp (N,1,H,W), sum(d), sum(d^2), sum(1/d)).

    NOTE: variance is later formed from these single-pass moments; per-block
    f32 partial sums limit accumulation error.
    TODO(synk): switch to a two-pass variance if var << mean^2 at large scale.
    """
    N, C, H, W = depth.shape
    L = C * H * W
    d2 = depth.reshape(N, L)                        # free reshape, L in lanes

    # rows: multiple of 8 or exactly N (second-to-last block dim legality).
    rows_cap = max(1, block_bytes_cap // (128 * 4))
    rows = _pick_aligned_tile(N, 8, rows_cap, prefer_split=True)
    # l_tile: multiple of 128 or exactly L; if the N axis did not split, try to
    # split L so the grid has >= 2 steps (pipelining + second TC on v7x).
    l_cap = max(128, block_bytes_cap // (rows * 4))
    l_tile = _pick_aligned_tile(L, 128, l_cap, prefer_split=(rows == N))
    gn, gl = N // rows, L // l_tile

    blk = rows * l_tile * 4
    disp, part = pl.pallas_call(
        functools.partial(_depth_stats_kernel, approx=approx_reciprocal),
        out_shape=(
            jax.ShapeDtypeStruct((N, L), jnp.float32),
            jax.ShapeDtypeStruct((gn * gl, 8, 128), jnp.float32),
        ),
        grid=(gn, gl),
        in_specs=[pl.BlockSpec((rows, l_tile), lambda i, l: (i, l))],
        out_specs=(
            pl.BlockSpec((rows, l_tile), lambda i, l: (i, l)),
            pl.BlockSpec((1, 8, 128), lambda i, l: (i * gl + l, 0, 0)),
        ),
        compiler_params=pltpu.CompilerParams(
            dimension_semantics=("parallel", "parallel"),
            vmem_limit_bytes=_vmem_limit_bytes(2 * blk + 8 * 128 * 4)),
    )(d2)

    sum_d = jnp.sum(part[:, 0, 0])
    sum_d2 = jnp.sum(part[:, 0, 1])
    sum_disp = jnp.sum(part[:, 0, 2])
    # NOTE: disp write could be dropped (halving this kernel's HBM traffic)
    # when the disparity endpoint is unused downstream; it is a module output
    # endpoint here, so it is kept.
    return disp.reshape(N, C, H, W), sum_d, sum_d2, sum_disp


# ----------------------------------------------------------------------------
# Translation kernel: residual + background, emitting the flipped map too
# ----------------------------------------------------------------------------
def _translation_kernel(res_ref, bg_ref, out_ref, flip_ref):
    t = res_ref[...] + bg_ref[...]     # (rows,h_tile,WC) + (rows,1,WC) bcast
    out_ref[...] = t                   # translation
    flip_ref[...] = t                  # same tile lands in the swapped-half
                                       # block of flipped_translation


def add_background_translation(residual, background, per_frame_batch,
                               *, block_bytes_cap=2 << 20):
    """residual (N,H,W,3) + background (N,3) -> (translation, flipped_translation).

    flipped_translation is translation with the two N-halves swapped; it is
    produced in the same pass via a second out_spec whose index_map rotates
    the frame-block index by half the grid (no extra HBM pass)."""
    N, H, W, C = residual.shape
    B = per_frame_batch
    assert N == 2 * B, "expected the two frames of each pair stacked on dim 0"
    WC = W * C
    res2 = residual.reshape(N, H, WC)               # channels folded into lanes
    # Tiny (N,1,W*3) broadcast pattern; stays resident across the h grid axis.
    bg = jnp.tile(background.reshape(N, 1, 1, C), (1, 1, W, 1)).reshape(N, 1, WC)

    # rows must divide B so the half-swap stays block-aligned; rows <= B also
    # guarantees >= 2 grid steps along the frame axis (v7x megacore).
    h_unit = 8 if (H % 8 == 0 and H >= 8) else H
    rows_cap = max(1, block_bytes_cap // max(1, h_unit * WC * 4))
    rows = max([d for d in _divisors(B) if d <= rows_cap], default=1)
    h_cap = max(1, block_bytes_cap // max(1, rows * WC * 4))
    h_tile = _pick_aligned_tile(H, 8, h_cap)
    gn, gh = N // rows, H // h_tile
    g_half = gn // 2                                 # rows | B  =>  gn even

    blk = rows * h_tile * WC * 4
    bg_blk = rows * WC * 4
    out, flipped = pl.pallas_call(
        _translation_kernel,
        out_shape=(jax.ShapeDtypeStruct((N, H, WC), jnp.float32),
                   jax.ShapeDtypeStruct((N, H, WC), jnp.float32)),
        grid=(gn, gh),
        in_specs=[
            pl.BlockSpec((rows, h_tile, WC), lambda i, h: (i, h, 0)),
            pl.BlockSpec((rows, 1, WC), lambda i, h: (i, 0, 0)),
        ],
        out_specs=(
            pl.BlockSpec((rows, h_tile, WC), lambda i, h: (i, h, 0)),
            pl.BlockSpec((rows, h_tile, WC),
                         lambda i, h: ((i + g_half) % gn, h, 0)),
        ),
        compiler_params=pltpu.CompilerParams(
            dimension_semantics=("parallel", "parallel"),
            vmem_limit_bytes=_vmem_limit_bytes(3 * blk + bg_blk)),
    )(res2, bg)
    return out.reshape(N, H, W, C), flipped.reshape(N, H, W, C)


# ----------------------------------------------------------------------------
# Glue (parameter setup / concatenation) in plain JAX
# ----------------------------------------------------------------------------
def make_intrinsics_matrix(fx, fy, cx, cy):
    zeros = jnp.zeros_like(fx)
    ones = jnp.ones_like(fx)
    r1 = jnp.stack([fx, zeros, cx], axis=-1)
    r2 = jnp.stack([zeros, fy, cy], axis=-1)
    r3 = jnp.stack([zeros, zeros, ones], axis=-1)
    return jnp.stack([r1, r2, r3], axis=1)


class DMPLossPallas:
    def __init__(self, default_weights):
        self.default_weights = default_weights
        self.default_params = {
            'target_depth_stop_gradient': True,
            'scale_normalization': False,
            'num_scales': 1,
        }
        self._output_endpoints = {}

    def __call__(self, endpoints):
        # Two-frame stacking on dim 0, as in the reference forward.
        assert len(endpoints['predicted_depth']) == 2, "expects frame pairs"
        depth_stack = jnp.concatenate(endpoints['predicted_depth'], axis=0)
        residual_translation = jnp.concatenate(
            endpoints['residual_translation'], axis=0)
        background_translation = jnp.concatenate(
            endpoints['background_translation'], axis=0)
        intrinsics_mat = jnp.concatenate(endpoints['intrinsics_mat'], axis=0)
        del intrinsics_mat  # only consumed by unavailable external modules
        per_frame_batch = endpoints['predicted_depth'][0].shape[0]

        _losses = {k: jnp.float32(0.0) for k in self.default_weights}

        # num_scales == 1 -> pyramids are just the inputs; single scale s = 0.
        scale_w = 1.0

        # ---- depth statistics / depth_variance loss (Pallas kernel) --------
        disp, sum_d, sum_d2, _sum_disp = depth_stats(depth_stack)
        count = jnp.float32(depth_stack.size)
        mean_depth = sum_d / count
        # mean((d/m - 1)^2) with m = mean(d)  ==  E[d^2]/m^2 - 1
        depth_var = sum_d2 / (count * mean_depth * mean_depth) - 1.0
        _losses['depth_variance'] = scale_w * 1.0 / depth_var
        self._output_endpoints['disparity'] = disp
        # TODO(synk): regularizers.joint_bilateral_smoothing unavailable ->
        # depth_smoothing term left at 0 (_sum_disp stays fused in the kernel
        # so no extra HBM pass would be needed to reinstate it).

        # ---- translation maps (single Pallas pass writes both maps) --------
        translation, flipped_translation = add_background_translation(
            residual_translation, background_translation, per_frame_batch)
        self._output_endpoints['trans'] = translation
        self._output_endpoints['inv_trans'] = flipped_translation

        # TODO(synk): transform_depth_map.using_motion_vector unavailable -> transformed_depth skipped.
        # TODO(synk): consistency_losses.rgbd_and_motion_consistency_loss unavailable -> depth/rgb/ssim/rotation/translation consistency terms left at 0.
        # TODO(synk): regularizers.normalize_motion_map/l1smoothness/sqrt_sparsity unavailable -> motion_smoothing / motion_drift terms left at 0.
        # TODO(synk): intrinsics_utils.invert_intrinsics_matrix unavailable (only feeds the skipped warp).

        total = jnp.float32(0.0)
        for k, w in self.default_weights.items():
            total = total + _losses[k] * w * 2
        return total


# ----------------------------------------------------------------------------
# Driver
# ----------------------------------------------------------------------------
if __name__ == "__main__":
    B, H, W = 2, 16, 16
    key = jax.random.PRNGKey(0)
    ks = jax.random.split(key, 6)

    def two(k, shape, lo, hi):
        k1, k2 = jax.random.split(k)
        return [jax.random.uniform(k1, shape, jnp.float32, lo, hi),
                jax.random.uniform(k2, shape, jnp.float32, lo, hi)]

    fx = jnp.full((B,), 100.0, jnp.float32)
    fy = jnp.full((B,), 100.0, jnp.float32)
    cx = jnp.full((B,), W / 2.0, jnp.float32)
    cy = jnp.full((B,), H / 2.0, jnp.float32)
    intr = make_intrinsics_matrix(fx, fy, cx, cy)

    endpoints = {
        'rgb': two(ks[0], (B, H, W, 3), 0.0, 1.0),
        'predicted_depth': two(ks[1], (B, 1, H, W), 0.5, 2.0),
        'residual_translation': two(ks[2], (B, H, W, 3), -0.1, 0.1),
        'background_translation': two(ks[3], (B, 3), -1.0, 1.0),
        'rotation': two(ks[4], (B, 3), -0.1, 0.1),
        'intrinsics_mat': [intr, intr],
    }

    # Deterministic default weights (depth_and_motion_learning defaults).
    default_weights = {
        'rgb_consistency': 1.0,
        'ssim': 3.0,
        'depth_consistency': 0.05,
        'depth_smoothing': 0.05,
        'depth_variance': 1e-6,
        'motion_smoothing': 1.0,
        'motion_drift': 0.2,
        'rotation_cycle_consistency': 1e-3,
        'translation_cycle_consistency': 5e-2,
    }

    loss_fn = DMPLossPallas(default_weights)
    loss = loss_fn(endpoints)
    loss = jax.block_until_ready(loss)

    # Sanity checks of the Pallas-computed pieces against pure-JAX references.
    d = jnp.concatenate(endpoints['predicted_depth'], axis=0)
    m_ref = jnp.mean(d)
    depth_var_ref = jnp.mean(jnp.square(d / m_ref - 1.0))
    loss_ref = default_weights['depth_variance'] * 2.0 / depth_var_ref
    assert jnp.isfinite(loss)
    assert jnp.allclose(loss, loss_ref, rtol=1e-4, atol=1e-6), (loss, loss_ref)

    # Disparity uses the EUP approximate reciprocal (~2^-12 rel. error), so the
    # tolerance here is relaxed; the loss value does not depend on it.
    disp_ref = 1.0 / d
    assert jnp.allclose(loss_fn._output_endpoints['disparity'], disp_ref,
                        rtol=5e-3, atol=1e-4)

    trans_ref = (jnp.concatenate(endpoints['residual_translation'], axis=0)
                 + jnp.concatenate(endpoints['background_translation'],
                                   axis=0).reshape(-1, 1, 1, 3))
    assert jnp.allclose(loss_fn._output_endpoints['trans'], trans_ref,
                        rtol=1e-6, atol=1e-6)

    flipped_trans_ref = (
        jnp.concatenate(endpoints['residual_translation'][::-1], axis=0)
        + jnp.concatenate(endpoints['background_translation'][::-1],
                          axis=0).reshape(-1, 1, 1, 3))
    assert jnp.allclose(loss_fn._output_endpoints['inv_trans'],
                        flipped_trans_ref, rtol=1e-6, atol=1e-6)

    print("KERNEL_OK")
</pallas_src>

<mosaic_0001>
module attributes {stable_mosaic.version = 11 : i64} {
  func.func @_depth_stats_kernel(%arg0: i32, %arg1: i32, %arg2: memref<4x128xf32, #tpu.memory_space<vmem>>, %arg3: memref<4x128xf32, #tpu.memory_space<vmem>>, %arg4: memref<1x8x128xf32, #tpu.memory_space<vmem>>) attributes {dimension_semantics = [#tpu.dimension_semantics<parallel>, #tpu.dimension_semantics<parallel>], iteration_bounds = array<i64: 1, 2>, scalar_prefetch = 0 : i64, scratch_operands = 0 : i64, tpu.core_type = #tpu.core_type<tc>, window_params = [{transform_indices = @transform_0, window_bounds = array<i64: 4, 128>}, {transform_indices = @transform_1, window_bounds = array<i64: 4, 128>}, {transform_indices = @transform_2, window_bounds = array<i64: 1, 8, 128>}]} {
    %c0 = arith.constant 0 : index
    %c0_0 = arith.constant 0 : index
    %0 = vector.load %arg2[%c0, %c0_0] : memref<4x128xf32, #tpu.memory_space<vmem>>, vector<4x128xf32>
    %1 = tpu.reciprocal %0 {approx = true} : vector<4x128xf32> -> vector<4x128xf32>
    %c0_1 = arith.constant 0 : index
    %c0_2 = arith.constant 0 : index
    %2 = vector.load %arg3[%c0_1, %c0_2] : memref<4x128xf32, #tpu.memory_space<vmem>>, vector<4x128xf32>
    tpu.vector_store %arg3[%c0_1, %c0_2], %1 {strides = array<i32>} : memref<4x128xf32, #tpu.memory_space<vmem>>, vector<4x128xf32>,
    %3 = vector.shape_cast %0 : vector<4x128xf32> to vector<1x4x128xf32>
    %cst = arith.constant dense<0.000000e+00> : vector<1xf32>
    %4 = vector.multi_reduction <add>, %3, %cst [1, 2] : vector<1x4x128xf32> to vector<1xf32>
    %5 = vector.shape_cast %4 : vector<1xf32> to vector<1x1x1xf32>
    %6 = vector.extract %5[0, 0, 0] : f32 from vector<1x1x1xf32>
    %7 = arith.mulf %0, %0 : vector<4x128xf32>
    %8 = vector.shape_cast %7 : vector<4x128xf32> to vector<1x4x128xf32>
    %cst_3 = arith.constant dense<0.000000e+00> : vector<1xf32>
    %9 = vector.multi_reduction <add>, %8, %cst_3 [1, 2] : vector<1x4x128xf32> to vector<1xf32>
    %10 = vector.shape_cast %9 : vector<1xf32> to vector<1x1x1xf32>
    %11 = vector.extract %10[0, 0, 0] : f32 from vector<1x1x1xf32>
    %12 = vector.shape_cast %1 : vector<4x128xf32> to vector<1x4x128xf32>
    %cst_4 = arith.constant dense<0.000000e+00> : vector<1xf32>
    %13 = vector.multi_reduction <add>, %12, %cst_4 [1, 2] : vector<1x4x128xf32> to vector<1xf32>
    %14 = vector.shape_cast %13 : vector<1xf32> to vector<1x1x1xf32>
    %15 = vector.extract %14[0, 0, 0] : f32 from vector<1x1x1xf32>
    %16 = tpu.iota {dimensions = array<i32: 1>} : vector<8x128xi32>
    %c0_i32 = arith.constant 0 : i32
    %17 = vector.broadcast %c0_i32 : i32 to vector<8x128xi32>
    %18 = arith.cmpi eq, %16, %17 : vector<8x128xi32>
    %c1_i32 = arith.constant 1 : i32
    %19 = vector.broadcast %c1_i32 : i32 to vector<8x128xi32>
    %20 = arith.cmpi eq, %16, %19 : vector<8x128xi32>
    %c2_i32 = arith.constant 2 : i32
    %21 = vector.broadcast %c2_i32 : i32 to vector<8x128xi32>
    %22 = arith.cmpi eq, %16, %21 : vector<8x128xi32>
    %cst_5 = arith.constant 0.000000e+00 : f32
    %23 = vector.broadcast %15 : f32 to vector<8x128xf32>
    %24 = vector.broadcast %cst_5 : f32 to vector<8x128xf32>
    %25 = arith.select %22, %23, %24 : vector<8x128xi1>, vector<8x128xf32>
    %26 = vector.broadcast %11 : f32 to vector<8x128xf32>
    %27 = arith.select %20, %26, %25 : vector<8x128xi1>, vector<8x128xf32>
    %28 = vector.broadcast %6 : f32 to vector<8x128xf32>
    %29 = arith.select %18, %28, %27 : vector<8x128xi1>, vector<8x128xf32>
    %c0_6 = arith.constant 0 : index
    %c0_7 = arith.constant 0 : index
    %c0_8 = arith.constant 0 : index
    %30 = vector.load %arg4[%c0_6, %c0_7, %c0_8] : memref<1x8x128xf32, #tpu.memory_space<vmem>>, vector<1x8x128xf32>
    %31 = vector.shape_cast %30 : vector<1x8x128xf32> to vector<8x128xf32>
    %32 = vector.shape_cast %29 : vector<8x128xf32> to vector<1x8x128xf32>
    tpu.vector_store %arg4[%c0_6, %c0_7, %c0_8], %32 {strides = array<i32>} : memref<1x8x128xf32, #tpu.memory_space<vmem>>, vector<1x8x128xf32>,
    return
  }
  func.func @transform_0(%arg0: i32, %arg1: i32) -> (i32, i32) {
    %c0_i32 = arith.constant 0 : i32
    return %arg0, %arg1 : i32, i32
  }
  func.func @transform_1(%arg0: i32, %arg1: i32) -> (i32, i32) {
    %c0_i32 = arith.constant 0 : i32
    return %arg0, %arg1 : i32, i32
  }
  func.func @transform_2(%arg0: i32, %arg1: i32) -> (i32, i32, i32) {
    %c2_i32 = arith.constant 2 : i32
    %0 = arith.muli %arg0, %c2_i32 : i32
    %1 = arith.addi %0, %arg1 : i32
    %c0_i32 = arith.constant 0 : i32
    %c0_i32_0 = arith.constant 0 : i32
    %c0_i32_1 = arith.constant 0 : i32
    return %1, %c0_i32, %c0_i32_0 : i32, i32, i32
  }
}

</mosaic_0001>

<llo_original>
// kernel: tpu_custom_call.1
$region0: #{tpu_custom_call.1}
  #allocation0 [shape = 'u32[]', space=smem, size = 0x4, offset = 0x4, fixed_abs, tag = 'smem constant byte address 0x4 - core index']
  #allocation1 [shape = 'u32[144,128]{1,0:T(1,128)}', space=vmem, size = 0x12000, scoped, tag = 'internal scratch']
  %s0 = inlined_call_operand.hbm [shape: f32[4,256], index: 0, kind: input, shape index: {}]
  %s1 = inlined_call_operand.hbm [shape: f32[4,256], index: 1, kind: output, shape index: {0}]
  %s2 = inlined_call_operand.hbm [shape: f32[2,8,128], index: 2, kind: output, shape index: {1}]
  %3 = xla_tuple %s1, %s2
  %s4 = sld [smem:[#allocation0]]
  $region49: #{tpu_custom_call.1} parent=0
    _
  %s6 = ssub.s32 1, %s4
  %s7 = scalar_select 0, %s6, %s4
  $region1: #{tpu_custom_call.1} parent=0
    #allocation2 [shape = 'u8[4096]{0}', space=vmem, size = 0x1000, scoped, tag = 'input window, operand 0']
    #allocation3 [shape = 's32[2]{0}', space=sflag, size = 0x8, scoped, tag = 'scoped memory for tpu_custom_call.1']
    #allocation4 [shape = 's32[2]{0}', space=sflag, size = 0x8, scoped, tag = 'scoped memory for tpu_custom_call.1']
    #allocation5 [shape = 'u8[4096]{0}', space=vmem, size = 0x1000, scoped, tag = 'output window, operand 0']
    #allocation6 [shape = 'u8[8192]{0}', space=vmem, size = 0x2000, scoped, tag = 'output window, operand 1']
    #allocation7 [shape = 's32[2]{0}', space=sflag, size = 0x8, scoped, tag = 'scoped memory for tpu_custom_call.1']
    %8 = vsyncpa [#allocation3], 0
    %s9 = scalar_lea.sflag [#allocation3], 1
    %10 = vsyncpa %s9, 0
    %11 = vsyncpa [#allocation4], 0
    %s12 = scalar_lea.sflag [#allocation4], 1
    %13 = vsyncpa %s12, 0
    %14 = vsyncpa [#allocation7], 0
    %s15 = scalar_lea.sflag [#allocation7], 1
    %16 = vsyncpa %s15, 0
    loop: start=0, step=1, limit=4
    $region2: #{tpu_custom_call.1} parent=1 // loop_pre_header
      _
    $region3: #{tpu_custom_call.1} parent=1 // loop_header
      %s18 = sphi 0, %s22
      %p19 = scmp.ge.s32.totalorder %s18, 4
      %s25 = sphi 0, %s37
      %s26 = sphi 0, %s33
      %s27 = sphi 0, %s25
      %s28 = sphi 0, %s26
      %s29 = sphi 0, %s27
      %s30 = sphi 0, %s28
      %s42 = sphi 0, %s44
      %s45 = sphi 0, %s42
      %s46 = sphi 0, %s45
      %s62 = sphi 0, %s46
      %s70 = sphi 0, %s72
      %s73 = sphi 0, %s70
      %s74 = sphi 0, %s73
      %s90 = sphi 0, %s74
      %s100 = sphi 0, %s102
      %s103 = sphi 0, %s100
      %s104 = sphi 0, %s103
      %s120 = sphi 0, %s104
    $region4: #{tpu_custom_call.1} parent=1 // loop_header_branch
      %21 = sbr.rel (%p19) target = $region8
    $region5: #{tpu_custom_call.1} parent=1 // loop_body
      %s23 = ssub.s32 %s18, 1
      %s24 = ssub.s32 %s18, 2
      %s31 = sadd.s32 1, %s26
      %p32 = scmp.ge.s32.totalorder %s31, 2
      %s33 = scalar_select %p32, 0, %s31
      %s34 = sadd.s32 1, %s25
      %s35 = scalar_select %p32, %s34, %s25
      %p36 = scmp.ge.s32.totalorder %s35, 1
      %s37 = scalar_select %p36, 0, %s35
      %s38 = ssub.s32 %s25, %s37
      %s39 = ssub.s32 %s26, %s33
      %s40 = sor.u32 %s38, %s39
      %p41 = scmp.eq.s32.totalorder %s40, 0
      %s43 = sadd.s32 %s42, 1
      %s44 = scalar_select %p41, %s42, %s43
      %p47 = pneg %p41
      %p48 = scmp.eq.s32.totalorder %s18, 1
      %p49 = por %p47, %p48
      %p50 = scmp.ne.s32.totalorder %s42, %s45
      %p51 = scmp.eq.s32.totalorder %s18, 0
      %p52 = por %p50, %p51
      %p53 = scmp.ne.s32.totalorder %s42, %s45
      %p54 = scmp.eq.s32.totalorder %s23, 1
      %p55 = por %p53, %p54
      %p56 = scmp.ne.s32.totalorder %s45, %s46
      %p57 = scmp.eq.s32.totalorder %s23, 0
      %p58 = por %p56, %p57
      %p59 = scmp.ne.s32.totalorder %s45, %s46
      %p60 = scmp.eq.s32.totalorder %s24, 1
      %p61 = por %p59, %p60
      %p63 = scmp.ne.s32.totalorder %s46, %s62
      %p64 = scmp.eq.s32.totalorder %s24, 0
      %p65 = por %p63, %p64
      %s66 = ssub.s32 %s25, %s37
      %s67 = ssub.s32 %s26, %s33
      %s68 = sor.u32 %s66, %s67
      %p69 = scmp.eq.s32.totalorder %s68, 0
      %s71 = sadd.s32 %s70, 1
      %s72 = scalar_select %p69, %s70, %s71
      %p75 = pneg %p69
      %p76 = scmp.eq.s32.totalorder %s18, 1
      %p77 = por %p75, %p76
      %p78 = scmp.ne.s32.totalorder %s70, %s73
      %p79 = scmp.eq.s32.totalorder %s18, 0
      %p80 = por %p78, %p79
      %p81 = scmp.ne.s32.totalorder %s70, %s73
      %p82 = scmp.eq.s32.totalorder %s23, 1
      %p83 = por %p81, %p82
      %p84 = scmp.ne.s32.totalorder %s73, %s74
      %p85 = scmp.eq.s32.totalorder %s23, 0
      %p86 = por %p84, %p85
      %p87 = scmp.ne.s32.totalorder %s73, %s74
      %p88 = scmp.eq.s32.totalorder %s24, 1
      %p89 = por %p87, %p88
      %p91 = scmp.ne.s32.totalorder %s74, %s90
      %p92 = scmp.eq.s32.totalorder %s24, 0
      %p93 = por %p91, %p92
      %s94 = smul.u32 %s25, 2
      %s95 = sadd.s32 %s94, %s26
      %s96 = smul.u32 %s37, 2
      %s97 = sadd.s32 %s96, %s33
      %s98 = ssub.s32 %s95, %s97
      %p99 = scmp.eq.s32.totalorder %s98, 0
      %s101 = sadd.s32 %s100, 1
      %s102 = scalar_select %p99, %s100, %s101
      %p105 = pneg %p99
      %p106 = scmp.eq.s32.totalorder %s18, 1
      %p107 = por %p105, %p106
      %p108 = scmp.ne.s32.totalorder %s100, %s103
      %p109 = scmp.eq.s32.totalorder %s18, 0
      %p110 = por %p108, %p109
      %p111 = scmp.ne.s32.totalorder %s100, %s103
      %p112 = scmp.eq.s32.totalorder %s23, 1
      %p113 = por %p111, %p112
      %p114 = scmp.ne.s32.totalorder %s103, %s104
      %p115 = scmp.eq.s32.totalorder %s23, 0
      %p116 = por %p114, %p115
      %p117 = scmp.ne.s32.totalorder %s103, %s104
      %p118 = scmp.eq.s32.totalorder %s24, 1
      %p119 = por %p117, %p118
      %p121 = scmp.ne.s32.totalorder %s104, %s120
      %p122 = scmp.eq.s32.totalorder %s24, 0
      %p123 = por %p121, %p122
      %p124 = scmp.le.s32.totalorder 1, %s18
      %p125 = scmp.lt.s32.totalorder %s18, 3
      %p126 = pnand %p124, %p125
      %p127 = pneg %p126
      // Predicated region
      $region9: #{tpu_custom_call.1} parent=5 // pred_check
        _
      $region10: #{tpu_custom_call.1} parent=5 // pred_check_branch
        %129 = sbr.rel (%p126) target = $region12
      $region11: #{tpu_custom_call.1} parent=5 // pred_region
        %s130 = ssub.s32 %s18, 1
      $region12: #{tpu_custom_call.1} parent=5 // pred_fallthru
        _
      %p131 = scmp.lt.s32.totalorder %s18, 2
      // Predicated region
      $region13: #{tpu_custom_call.1} parent=5 // pred_check
        %p132 = pneg %p131
      $region14: #{tpu_custom_call.1} parent=5 // pred_check_branch
        %134 = sbr.rel (%p132) target = $region16
      $region15: #{tpu_custom_call.1} parent=5 // pred_region
        // Predicated region
        $region17: #{tpu_custom_call.1} parent=15 // pred_check
          %p135 = pneg %p52
        $region18: #{tpu_custom_call.1} parent=15 // pred_check_branch
          %137 = sbr.rel (%p135) target = $region20
        $region19: #{tpu_custom_call.1} parent=15 // pred_region
          %s138 = sand.u32 %s42, 1
          %s139 = scalar_lea.sflag [#allocation3], %s138
          %s140 = sand.u32 %s42, 1
          %s141 = smul.addr %s140, 4
          %s142 = scalar_lea.vmem [#allocation2], %s141
          %s144 = ssub.s32 64, 64
          %145 = vsyncadd %s139, %s144
          %s146 = smul.addr %s25, 2
          %s147 = sadd.s32 %s26, %s146
          %s148 = smul.addr %s147, 64
          %s149 = scalar_lea.hbm %s0, %s148
          %s151 = sshll.u32 %s142, 4
          %s152 = int_to_ptr.vmem [resolvable:$true] %s151
          %154 = dma.hbm_to_vmem [thread:$0]  %s149, 64, %s152, %s139
        $region20: #{tpu_custom_call.1} parent=15 // pred_fallthru
          _
      $region16: #{tpu_custom_call.1} parent=5 // pred_fallthru
        _
      %p155 = scmp.le.s32.totalorder 1, %s18
      %p156 = scmp.lt.s32.totalorder %s18, 3
      %p157 = pnand %p155, %p156
      %p158 = pneg %p157
      // Predicated region
      $region21: #{tpu_custom_call.1} parent=5 // pred_check
        _
      $region22: #{tpu_custom_call.1} parent=5 // pred_check_branch
        %160 = sbr.rel (%p157) target = $region24
      $region23: #{tpu_custom_call.1} parent=5 // pred_region
        %s161 = ssub.s32 %s18, 1
        %s162 = sand.u32 %s45, 1
        %s163 = scalar_lea.sflag [#allocation3], %s162
        %s164 = sand.u32 %s45, 1
        %s165 = smul.addr %s164, 4
        %s166 = scalar_lea.vmem [#allocation2], %s165
        // Predicated region
        $region25: #{tpu_custom_call.1} parent=23 // pred_check
          %p167 = pneg %p58
        $region26: #{tpu_custom_call.1} parent=23 // pred_check_branch
          %169 = sbr.rel (%p167) target = $region28
        $region27: #{tpu_custom_call.1} parent=23 // pred_region
          %170 = dma.done %s163, 64
        $region28: #{tpu_custom_call.1} parent=23 // pred_fallthru
          _
        %s171 = sand.u32 %s45, 1
        %s172 = scalar_lea.sflag [#allocation3], %s171
        %s173 = sand.u32 %s45, 1
        %s174 = smul.addr %s173, 4
        %s175 = scalar_lea.vmem [#allocation2], %s174
        %p176 = pneg %p58
        %p177 = pneg %p55
        %p178 = pneg %p86
        %p179 = pneg %p83
        %s180 = sand.u32 %s73, 1
        %s181 = scalar_lea.sflag [#allocation4], %s180
        %s182 = sand.u32 %s73, 1
        %s183 = smul.addr %s182, 4
        %s184 = scalar_lea.vmem [#allocation5], %s183
        %p185 = pneg %p116
        %p186 = pneg %p113
        %s187 = sand.u32 %s103, 1
        %s188 = scalar_lea.sflag [#allocation7], %s187
        %s189 = sand.u32 %s103, 1
        %s190 = smul.addr %s189, 8
        %s191 = scalar_lea.vmem [#allocation6], %s190
        %s192 = smul.u32 %s27, 2
        %s193 = sadd.s32 %s192, %s28
        %v194 = vld [vmem:[%s166] sm:$0xf]
        %v195 = vrcp.pop %v194
        %196 = vst [vmem:[%s184] sm:$0xf] %v195
        %vm197 = vcmask 1043456
        %v198 = vsel %vm197, %v194, 0.0
        %199 = vadd.xlane.f32.xlu0 %v198
        %v200 = vpop.xlane.xlu0 %199
        %v201 = vrot.slane %v200, 4
        %v202 = vadd.f32 %v200, %v201
        %v203 = vrot.slane %v202, 2
        %v204 = vadd.f32 %v202, %v203
        %v205 = vrot.slane %v204, 1
        %v206 = vadd.f32 %v204, %v205
        %s207 = vtos %v206
        %v208 = vmul.f32 %v194, %v194
        %v209 = vsel %vm197, %v208, 0.0
        %210 = vadd.xlane.f32.xlu0 %v209
        %v211 = vpop.xlane.xlu0 %210
        %v212 = vrot.slane %v211, 4
        %v213 = vadd.f32 %v211, %v212
        %v214 = vrot.slane %v213, 2
        %v215 = vadd.f32 %v213, %v214
        %v216 = vrot.slane %v215, 1
        %v217 = vadd.f32 %v215, %v216
        %s218 = vtos %v217
        %v219 = vsel %vm197, %v195, 0.0
        %220 = vadd.xlane.f32.xlu0 %v219
        %v221 = vpop.xlane.xlu0 %220
        %v222 = vrot.slane %v221, 4
        %v223 = vadd.f32 %v221, %v222
        %v224 = vrot.slane %v223, 2
        %v225 = vadd.f32 %v223, %v224
        %v226 = vrot.slane %v225, 1
        %v227 = vadd.f32 %v225, %v226
        %s228 = vtos %v227
        %v229 = vlaneseq
        %v230 = vand.u32 %v229, 127
        %vm231 = vcmp.eq.s32.totalorder %v230, 0
        %vm232 = vcmp.eq.s32.totalorder %v230, 1
        %vm233 = vcmp.eq.s32.totalorder %v230, 2
        %v234 = vstv %s228
        %v235 = vsel %vm233, %v234, 0.0
        %v236 = vstv %s218
        %v237 = vsel %vm232, %v236, %v235
        %v238 = vstv %s207
        %v239 = vsel %vm231, %v238, %v237
        %240 = vst [vmem:[%s191] sm:$0xff] %v239
        %s241 = sand.u32 %s73, 1
        %s242 = scalar_lea.sflag [#allocation4], %s241
        %s243 = sand.u32 %s73, 1
        %s244 = smul.addr %s243, 4
        %s245 = scalar_lea.vmem [#allocation5], %s244
        %s246 = sand.u32 %s103, 1
        %s247 = scalar_lea.sflag [#allocation7], %s246
        %s248 = sand.u32 %s103, 1
        %s249 = smul.addr %s248, 8
        %s250 = scalar_lea.vmem [#allocation6], %s249
        // Predicated region
        $region29: #{tpu_custom_call.1} parent=23 // pred_check
          %p251 = pneg %p83
        $region30: #{tpu_custom_call.1} parent=23 // pred_check_branch
          %253 = sbr.rel (%p251) target = $region32
        $region31: #{tpu_custom_call.1} parent=23 // pred_region
          %s255 = ssub.s32 64, 64
          %256 = vsyncadd %s242, %s255
          %s257 = smul.addr %s27, 2
          %s258 = sadd.s32 %s28, %s257
          %s259 = smul.addr %s258, 64
          %s260 = scalar_lea.hbm %s1, %s259
          %s262 = sshll.u32 %s245, 4
          %s263 = int_to_ptr.vmem [resolvable:$true] %s262
          %265 = dma.vmem_to_hbm [thread:$0]  %s263, 64, %s260, %s242
        $region32: #{tpu_custom_call.1} parent=23 // pred_fallthru
          _
        // Predicated region
        $region33: #{tpu_custom_call.1} parent=23 // pred_check
          %p266 = pneg %p113
        $region34: #{tpu_custom_call.1} parent=23 // pred_check_branch
          %268 = sbr.rel (%p266) target = $region36
        $region35: #{tpu_custom_call.1} parent=23 // pred_region
          %s269 = smul.u32 %s27, 2
          %s270 = sadd.s32 %s269, %s28
          %s272 = ssub.s32 128, 128
          %273 = vsyncadd %s247, %s272
          %s274 = smul.addr %s270, 128
          %s275 = scalar_lea.hbm %s2, %s274
          %s277 = sshll.u32 %s250, 4
          %s278 = int_to_ptr.vmem [resolvable:$true] %s277
          %280 = dma.vmem_to_hbm [thread:$0]  %s278, 128, %s275, %s247
        $region36: #{tpu_custom_call.1} parent=23 // pred_fallthru
          _
      $region24: #{tpu_custom_call.1} parent=5 // pred_fallthru
        _
      %p281 = scmp.le.s32.totalorder 2, %s18
      // Predicated region
      $region37: #{tpu_custom_call.1} parent=5 // pred_check
        %p282 = pneg %p281
      $region38: #{tpu_custom_call.1} parent=5 // pred_check_branch
        %284 = sbr.rel (%p282) target = $region40
      $region39: #{tpu_custom_call.1} parent=5 // pred_region
        %s285 = ssub.s32 %s18, 2
        // Predicated region
        $region41: #{tpu_custom_call.1} parent=39 // pred_check
          %p286 = pneg %p89
        $region42: #{tpu_custom_call.1} parent=39 // pred_check_branch
          %288 = sbr.rel (%p286) target = $region44
        $region43: #{tpu_custom_call.1} parent=39 // pred_region
          %s289 = sand.u32 %s74, 1
          %s290 = scalar_lea.sflag [#allocation4], %s289
          %s291 = sand.u32 %s74, 1
          %s292 = smul.addr %s291, 4
          %s293 = scalar_lea.vmem [#allocation5], %s292
          %294 = dma.done %s290, 64
        $region44: #{tpu_custom_call.1} parent=39 // pred_fallthru
          _
        // Predicated region
        $region45: #{tpu_custom_call.1} parent=39 // pred_check
          %p295 = pneg %p119
        $region46: #{tpu_custom_call.1} parent=39 // pred_check_branch
          %297 = sbr.rel (%p295) target = $region48
        $region47: #{tpu_custom_call.1} parent=39 // pred_region
          %s298 = sand.u32 %s104, 1
          %s299 = scalar_lea.sflag [#allocation7], %s298
          %s300 = sand.u32 %s104, 1
          %s301 = smul.addr %s300, 8
          %s302 = scalar_lea.vmem [#allocation6], %s301
          %303 = dma.done %s299, 128
        $region48: #{tpu_custom_call.1} parent=39 // pred_fallthru
          _
      $region40: #{tpu_custom_call.1} parent=5 // pred_fallthru
        _
    $region6: #{tpu_custom_call.1} parent=1 // loop_footer
      %s22 = sadd.s32 1, %s18
    $region7: #{tpu_custom_call.1} parent=1 // loop_footer_branch
      %17 = sbr.rel target = $region3
    $region8: #{tpu_custom_call.1} parent=1 // loop_exit
      _
    %304 = vsyncpa [#allocation3], 1
    %s305 = scalar_lea.sflag [#allocation3], 1
    %306 = vsyncpa %s305, 1
    %307 = vsyncpa [#allocation4], 1
    %s308 = scalar_lea.sflag [#allocation4], 1
    %309 = vsyncpa %s308, 1
    %310 = vsyncpa [#allocation7], 1
    %s311 = scalar_lea.sflag [#allocation7], 1
    %312 = vsyncpa %s311, 1

</llo_original>
